<compile_context>
chip_gen: v7x
topology: tpu7x:2x2x1
jax: 0.10.0
libtpu: 0.0.40
codegen_flags: <defaults>
</compile_context>

<pallas_src>
import functools
import math

import numpy as np
import jax
import jax.numpy as jnp
from jax.experimental import pallas as pl
from jax.experimental.pallas import tpu as pltpu


def _lcm(a, b):
    return a * b // math.gcd(a, b)


# ----------------------------------------------------------------------------
# Pallas kernel: fused windowed inverse-DFT matmul + slice-accumulate OLA + norm
# ----------------------------------------------------------------------------
def _istft_kernel(x_ref, basis_ref, inv_env_ref, out_ref, *, Bb, T, hop, R):
    # one MXU matmul for the whole batch tile: (Bb*T, K) @ (K, n_fft) -> frames
    frames = jnp.dot(x_ref[...], basis_ref[...],
                     preferred_element_type=jnp.float32)

    # overlap-add by slice accumulation directly into the output block
    out_ref[...] = jnp.zeros_like(out_ref)
    for b in range(Bb):                          # static unroll (small)
        fb = frames[b * T:(b + 1) * T, :]        # (T, n_fft) value slice
        for j in range(R):                       # static, R = n_fft // hop
            out_ref[b, pl.ds(j, T), :] += fb[:, j * hop:(j + 1) * hop]
        # torch.istft normalization: multiply by precomputed 1 / OLA(window^2)
        out_ref[b] = out_ref[b] * inv_env_ref[...]


# ----------------------------------------------------------------------------
# parameter construction (deterministic, derived from the module's __init__)
# ----------------------------------------------------------------------------
def _make_istft_params(n_fft, win_length, hop, n_frames, K):
    F = n_fft // 2 + 1
    n = np.arange(n_fft)
    k = np.arange(F)
    ang = 2.0 * np.pi * np.outer(k, n) / n_fft
    c = np.full((F, 1), 2.0)
    c[0, 0] = 1.0
    if n_fft % 2 == 0:
        c[-1, 0] = 1.0

    # hann window (periodic, torch.hann_window default), padded to n_fft if needed
    w = 0.5 - 0.5 * np.cos(2.0 * np.pi * np.arange(win_length) / win_length)
    if win_length < n_fft:
        lp = (n_fft - win_length) // 2
        w = np.pad(w, (lp, n_fft - win_length - lp))

    # fused iDFT basis: rows [0,F) take the real plane, rows [F,2F) the imag plane,
    # rows [2F,K) are zero padding for lane alignment.  window + 1/N + hermitian
    # doubling are folded in.
    basis = np.zeros((K, n_fft), dtype=np.float64)
    basis[:F] = (c * np.cos(ang) / n_fft) * w[None, :]
    basis[F:2 * F] = (-c * np.sin(ang) / n_fft) * w[None, :]

    # reciprocal of the squared-window overlap-add envelope (constant given n_frames)
    R = n_fft // hop
    num_hops = n_frames + R - 1
    env = np.zeros(num_hops * hop, dtype=np.float64)
    for t in range(n_frames):
        env[t * hop:t * hop + n_fft] += w ** 2
    # TODO(synk): torch.istft errors on a ~0 envelope; we clamp instead (only the
    # center-trimmed edges are affected for the default hann / center=True config).
    env = np.maximum(env, 1e-11)
    inv_env = (1.0 / env).reshape(num_hops, hop)

    return basis.astype(np.float32), inv_env.astype(np.float32)


# ----------------------------------------------------------------------------
# batch-tile sizing: fill the MXU M dimension, stay inside a conservative VMEM budget
# ----------------------------------------------------------------------------
def _choose_batch_block(B, T, K, n_fft, num_hops, hop, in_itemsize,
                        target_rows=256, vmem_budget=16 * 2 ** 20):
    # granule so Bb*T stays sublane(8)-aligned when the grid has more than one step
    unit = _lcm(T, 8) // T
    per_b = (2 * T * K * in_itemsize           # fused spec input, double-buffered
             + 2 * num_hops * hop * 4          # OLA output, double-buffered
             + T * n_fft * 4)                  # f32 frames intermediate
    fixed = 2 * K * n_fft * in_itemsize + 2 * num_hops * hop * 4
    bb = max(1, -(-target_rows // T))          # ceil: ~256 MXU rows per matmul
    if fixed + bb * per_b > vmem_budget:
        bb = max(1, (vmem_budget - fixed) // per_b)
    bb = max(unit, (bb // unit) * unit)
    bb = min(bb, -(-B // unit) * unit)         # never larger than the padded batch
    return int(bb)


# ----------------------------------------------------------------------------
# pallas_call wrapper
# ----------------------------------------------------------------------------
def pallas_istft(spec, n_fft, win_length, hop, *, compute_dtype=jnp.bfloat16):
    """spec: complex64 [B, T, F] -> float32 [B, n_fft + hop*(T-1)] (untrimmed OLA)."""
    B, T, F = spec.shape
    assert F == n_fft // 2 + 1
    # TODO(synk): hop lengths that do not divide n_fft need a different OLA tiling.
    assert n_fft % hop == 0

    R = n_fft // hop
    num_hops = T + R - 1
    K = -(-2 * F // 128) * 128                 # lane-aligned fused contraction depth

    basis_np, inv_env_np = _make_istft_params(n_fft, win_length, hop, T, K)
    basis = jnp.asarray(basis_np).astype(compute_dtype)
    inv_env = jnp.asarray(inv_env_np)          # stays f32

    # one fused (re | im | zero-pad) operand -> single DMA stream, single matmul
    re = jnp.real(spec).astype(compute_dtype)
    im = jnp.imag(spec).astype(compute_dtype)
    parts = [re, im]
    pad_cols = K - 2 * F
    if pad_cols:
        parts.append(jnp.zeros((B, T, pad_cols), compute_dtype))
    x = jnp.concatenate(parts, axis=-1)        # (B, T, K)

    in_itemsize = jnp.dtype(compute_dtype).itemsize
    Bb = _choose_batch_block(B, T, K, n_fft, num_hops, hop, in_itemsize)
    NB = -(-B // Bb)
    Bp = NB * Bb
    if Bp != B:
        x = jnp.pad(x, ((0, Bp - B), (0, 0), (0, 0)))
    x2d = x.reshape(Bp * T, K)                 # fold batch + frames into MXU rows

    # TODO(synk): for very long utterances (huge T) add a second grid axis over frame
    #             tiles with an R-1 row OLA carry (also feeds v7x's second TensorCore).
    kernel = functools.partial(_istft_kernel, Bb=Bb, T=T, hop=hop, R=R)
    out = pl.pallas_call(
        kernel,
        out_shape=jax.ShapeDtypeStruct((Bp, num_hops, hop), jnp.float32),
        grid_spec=pltpu.PrefetchScalarGridSpec(
            num_scalar_prefetch=0,
            grid=(NB,),
            in_specs=[
                pl.BlockSpec((Bb * T, K), lambda g: (g, 0)),       # fused re|im spec
                pl.BlockSpec((K, n_fft), lambda g: (0, 0)),        # windowed iDFT basis
                pl.BlockSpec((num_hops, hop), lambda g: (0, 0)),   # 1 / OLA(window^2)
            ],
            out_specs=pl.BlockSpec((Bb, num_hops, hop), lambda g: (g, 0, 0)),
        ),
        compiler_params=pltpu.CompilerParams(
            dimension_semantics=("parallel",),
            vmem_limit_bytes=32 * 2 ** 20),
    )(x2d, basis, inv_env)

    return out[:B].reshape(B, num_hops * hop)


# ----------------------------------------------------------------------------
# STFTDecoder.forward equivalent
# ----------------------------------------------------------------------------
def stft_decoder_forward(spec, ilens, *, n_fft=256, win_length=None,
                         hop_length=128, center=True,
                         compute_dtype=jnp.bfloat16):
    """spec: complex [B, T, F] or [B, T, C, F]; ilens: int lengths [B]."""
    # TODO(synk): normalized=True / onesided=False / window=None istft variants
    #             are not implemented (module defaults are covered).
    if win_length is None:
        win_length = n_fft

    bs = spec.shape[0]
    multi_channel = spec.ndim == 4
    if multi_channel:
        B, T, C, F = spec.shape
        spec = jnp.transpose(spec, (0, 2, 1, 3)).reshape(B * C, T, F)

    y = pallas_istft(spec, n_fft, win_length, hop_length,
                     compute_dtype=compute_dtype)            # (B', ola_len)

    pad = n_fft // 2 if center else 0
    length = int(np.asarray(ilens).max())
    avail = y.shape[1] - pad
    if length <= avail:
        wav = y[:, pad:pad + length]
    else:
        wav = jnp.pad(y[:, pad:], ((0, 0), (0, length - avail)))

    if multi_channel:
        wav = wav.reshape(bs, -1, wav.shape[1]).transpose(0, 2, 1)  # (B, samples, C)
    return wav, ilens


# ----------------------------------------------------------------------------
# pure-numpy reference (torch.istft semantics for the defaults used here)
# ----------------------------------------------------------------------------
def ref_istft_numpy(spec, ilens, n_fft, win_length, hop, center=True):
    spec = np.asarray(spec)
    B, T, F = spec.shape
    w = 0.5 - 0.5 * np.cos(2.0 * np.pi * np.arange(win_length) / win_length)
    frames = np.fft.irfft(spec, n=n_fft, axis=-1) * w[None, None, :]
    L = n_fft + hop * (T - 1)
    y = np.zeros((B, L))
    env = np.zeros(L)
    for t in range(T):
        y[:, t * hop:t * hop + n_fft] += frames[:, t]
        env[t * hop:t * hop + n_fft] += w ** 2
    pad = n_fft // 2 if center else 0
    length = int(np.asarray(ilens).max())
    return y[:, pad:pad + length] / env[None, pad:pad + length]


if __name__ == "__main__":
    n_fft, hop = 256, 128
    win_length = n_fft
    F = n_fft // 2 + 1          # 129
    B, T = 2, 12

    key = jax.random.PRNGKey(0)
    kr, ki = jax.random.split(key)
    re = jax.random.normal(kr, (B, T, F), jnp.float32)
    im = jax.random.normal(ki, (B, T, F), jnp.float32)
    spec = re + 1j * im                                   # complex64 [B, T, F]
    ilens = jnp.array([1408, 1200], dtype=jnp.int32)      # sample lengths

    wav, wav_lens = stft_decoder_forward(
        spec, ilens, n_fft=n_fft, win_length=win_length, hop_length=hop)
    wav = jax.block_until_ready(wav)

    ref = ref_istft_numpy(np.asarray(re) + 1j * np.asarray(im),
                          np.asarray(ilens), n_fft, win_length, hop)
    assert wav.shape == ref.shape, (wav.shape, ref.shape)
    err = float(np.max(np.abs(np.asarray(wav) - ref)))
    assert err < 1e-2, f"max abs err {err}"
    assert np.array_equal(np.asarray(wav_lens), np.asarray(ilens))

    print("KERNEL_OK")
</pallas_src>

<mosaic_0001>
module attributes {stable_mosaic.version = 11 : i64} {
  func.func @_istft_kernel(%arg0: i32, %arg1: memref<24x384xbf16, #tpu.memory_space<vmem>>, %arg2: memref<384x256xbf16, #tpu.memory_space<vmem>>, %arg3: memref<13x128xf32, #tpu.memory_space<vmem>>, %arg4: memref<2x13x128xf32, #tpu.memory_space<vmem>>) attributes {dimension_semantics = [#tpu.dimension_semantics<parallel>], iteration_bounds = array<i64: 1>, scalar_prefetch = 0 : i64, scratch_operands = 0 : i64, tpu.core_type = #tpu.core_type<tc>, window_params = [{transform_indices = @transform_0, window_bounds = array<i64: 24, 384>}, {pipeline_mode = #tpu.pipeline_mode<synchronous>, transform_indices = @transform_1, window_bounds = array<i64: 384, 256>}, {pipeline_mode = #tpu.pipeline_mode<synchronous>, transform_indices = @transform_2, window_bounds = array<i64: 13, 128>}, {transform_indices = @transform_3, window_bounds = array<i64: 2, 13, 128>}]} {
    %c0 = arith.constant 0 : index
    %c0_0 = arith.constant 0 : index
    %0 = vector.load %arg1[%c0, %c0_0] : memref<24x384xbf16, #tpu.memory_space<vmem>>, vector<24x384xbf16>
    %c0_1 = arith.constant 0 : index
    %c0_2 = arith.constant 0 : index
    %1 = vector.load %arg2[%c0_1, %c0_2] : memref<384x256xbf16, #tpu.memory_space<vmem>>, vector<384x256xbf16>
    %cst = arith.constant dense<0.000000e+00> : vector<24x256xf32>
    %2 = tpu.matmul %0, %1, %cst {dimension_numbers = #tpu.dot_dimension_numbers<[1], [0], [0], [1], [0, 0, 1, 1], [], []>} : vector<24x384xbf16>, vector<384x256xbf16>, vector<24x256xf32> -> vector<24x256xf32>
    %cst_3 = arith.constant 0.000000e+00 : f32
    %3 = vector.broadcast %cst_3 : f32 to vector<2x13x128xf32>
    %c0_4 = arith.constant 0 : index
    %c0_5 = arith.constant 0 : index
    %c0_6 = arith.constant 0 : index
    %4 = vector.load %arg4[%c0_4, %c0_5, %c0_6] : memref<2x13x128xf32, #tpu.memory_space<vmem>>, vector<2x13x128xf32>
    tpu.vector_store %arg4[%c0_4, %c0_5, %c0_6], %3 {strides = array<i32>} : memref<2x13x128xf32, #tpu.memory_space<vmem>>, vector<2x13x128xf32>,
    %5 = vector.extract_strided_slice %2 {offsets = [0, 0], sizes = [12, 256], strides = [1, 1]} : vector<24x256xf32> to vector<12x256xf32>
    %c0_7 = arith.constant 0 : index
    %c0_8 = arith.constant 0 : index
    %c0_9 = arith.constant 0 : index
    %6 = vector.load %arg4[%c0_7, %c0_8, %c0_9] : memref<2x13x128xf32, #tpu.memory_space<vmem>>, vector<1x12x128xf32>
    %7 = vector.shape_cast %6 : vector<1x12x128xf32> to vector<12x128xf32>
    %8 = vector.extract_strided_slice %5 {offsets = [0, 0], sizes = [12, 128], strides = [1, 1]} : vector<12x256xf32> to vector<12x128xf32>
    %9 = arith.addf %7, %8 : vector<12x128xf32>
    %c0_10 = arith.constant 0 : index
    %c0_11 = arith.constant 0 : index
    %c0_12 = arith.constant 0 : index
    %10 = vector.load %arg4[%c0_10, %c0_11, %c0_12] : memref<2x13x128xf32, #tpu.memory_space<vmem>>, vector<1x12x128xf32>
    %11 = vector.shape_cast %10 : vector<1x12x128xf32> to vector<12x128xf32>
    %12 = vector.shape_cast %9 : vector<12x128xf32> to vector<1x12x128xf32>
    tpu.vector_store %arg4[%c0_10, %c0_11, %c0_12], %12 {strides = array<i32>} : memref<2x13x128xf32, #tpu.memory_space<vmem>>, vector<1x12x128xf32>,
    %c0_13 = arith.constant 0 : index
    %c1 = arith.constant 1 : index
    %c0_14 = arith.constant 0 : index
    %13 = vector.load %arg4[%c0_13, %c1, %c0_14] : memref<2x13x128xf32, #tpu.memory_space<vmem>>, vector<1x12x128xf32>
    %14 = vector.shape_cast %13 : vector<1x12x128xf32> to vector<12x128xf32>
    %15 = vector.extract_strided_slice %5 {offsets = [0, 128], sizes = [12, 128], strides = [1, 1]} : vector<12x256xf32> to vector<12x128xf32>
    %16 = arith.addf %14, %15 : vector<12x128xf32>
    %c0_15 = arith.constant 0 : index
    %c1_16 = arith.constant 1 : index
    %c0_17 = arith.constant 0 : index
    %17 = vector.load %arg4[%c0_15, %c1_16, %c0_17] : memref<2x13x128xf32, #tpu.memory_space<vmem>>, vector<1x12x128xf32>
    %18 = vector.shape_cast %17 : vector<1x12x128xf32> to vector<12x128xf32>
    %19 = vector.shape_cast %16 : vector<12x128xf32> to vector<1x12x128xf32>
    tpu.vector_store %arg4[%c0_15, %c1_16, %c0_17], %19 {strides = array<i32>} : memref<2x13x128xf32, #tpu.memory_space<vmem>>, vector<1x12x128xf32>,
    %c0_18 = arith.constant 0 : index
    %c0_19 = arith.constant 0 : index
    %c0_20 = arith.constant 0 : index
    %20 = vector.load %arg4[%c0_18, %c0_19, %c0_20] : memref<2x13x128xf32, #tpu.memory_space<vmem>>, vector<1x13x128xf32>
    %21 = vector.shape_cast %20 : vector<1x13x128xf32> to vector<13x128xf32>
    %c0_21 = arith.constant 0 : index
    %c0_22 = arith.constant 0 : index
    %22 = vector.load %arg3[%c0_21, %c0_22] : memref<13x128xf32, #tpu.memory_space<vmem>>, vector<13x128xf32>
    %23 = arith.mulf %21, %22 : vector<13x128xf32>
    %c0_23 = arith.constant 0 : index
    %c0_24 = arith.constant 0 : index
    %c0_25 = arith.constant 0 : index
    %24 = vector.load %arg4[%c0_23, %c0_24, %c0_25] : memref<2x13x128xf32, #tpu.memory_space<vmem>>, vector<1x13x128xf32>
    %25 = vector.shape_cast %24 : vector<1x13x128xf32> to vector<13x128xf32>
    %26 = vector.shape_cast %23 : vector<13x128xf32> to vector<1x13x128xf32>
    tpu.vector_store %arg4[%c0_23, %c0_24, %c0_25], %26 {strides = array<i32>} : memref<2x13x128xf32, #tpu.memory_space<vmem>>, vector<1x13x128xf32>,
    %27 = vector.extract_strided_slice %2 {offsets = [12, 0], sizes = [12, 256], strides = [1, 1]} : vector<24x256xf32> to vector<12x256xf32>
    %c1_26 = arith.constant 1 : index
    %c0_27 = arith.constant 0 : index
    %c0_28 = arith.constant 0 : index
    %28 = vector.load %arg4[%c1_26, %c0_27, %c0_28] : memref<2x13x128xf32, #tpu.memory_space<vmem>>, vector<1x12x128xf32>
    %29 = vector.shape_cast %28 : vector<1x12x128xf32> to vector<12x128xf32>
    %30 = vector.extract_strided_slice %27 {offsets = [0, 0], sizes = [12, 128], strides = [1, 1]} : vector<12x256xf32> to vector<12x128xf32>
    %31 = arith.addf %29, %30 : vector<12x128xf32>
    %c1_29 = arith.constant 1 : index
    %c0_30 = arith.constant 0 : index
    %c0_31 = arith.constant 0 : index
    %32 = vector.load %arg4[%c1_29, %c0_30, %c0_31] : memref<2x13x128xf32, #tpu.memory_space<vmem>>, vector<1x12x128xf32>
    %33 = vector.shape_cast %32 : vector<1x12x128xf32> to vector<12x128xf32>
    %34 = vector.shape_cast %31 : vector<12x128xf32> to vector<1x12x128xf32>
    tpu.vector_store %arg4[%c1_29, %c0_30, %c0_31], %34 {strides = array<i32>} : memref<2x13x128xf32, #tpu.memory_space<vmem>>, vector<1x12x128xf32>,
    %c1_32 = arith.constant 1 : index
    %c1_33 = arith.constant 1 : index
    %c0_34 = arith.constant 0 : index
    %35 = vector.load %arg4[%c1_32, %c1_33, %c0_34] : memref<2x13x128xf32, #tpu.memory_space<vmem>>, vector<1x12x128xf32>
    %36 = vector.shape_cast %35 : vector<1x12x128xf32> to vector<12x128xf32>
    %37 = vector.extract_strided_slice %27 {offsets = [0, 128], sizes = [12, 128], strides = [1, 1]} : vector<12x256xf32> to vector<12x128xf32>
    %38 = arith.addf %36, %37 : vector<12x128xf32>
    %c1_35 = arith.constant 1 : index
    %c1_36 = arith.constant 1 : index
    %c0_37 = arith.constant 0 : index
    %39 = vector.load %arg4[%c1_35, %c1_36, %c0_37] : memref<2x13x128xf32, #tpu.memory_space<vmem>>, vector<1x12x128xf32>
    %40 = vector.shape_cast %39 : vector<1x12x128xf32> to vector<12x128xf32>
    %41 = vector.shape_cast %38 : vector<12x128xf32> to vector<1x12x128xf32>
    tpu.vector_store %arg4[%c1_35, %c1_36, %c0_37], %41 {strides = array<i32>} : memref<2x13x128xf32, #tpu.memory_space<vmem>>, vector<1x12x128xf32>,
    %c1_38 = arith.constant 1 : index
    %c0_39 = arith.constant 0 : index
    %c0_40 = arith.constant 0 : index
    %42 = vector.load %arg4[%c1_38, %c0_39, %c0_40] : memref<2x13x128xf32, #tpu.memory_space<vmem>>, vector<1x13x128xf32>
    %43 = vector.shape_cast %42 : vector<1x13x128xf32> to vector<13x128xf32>
    %c0_41 = arith.constant 0 : index
    %c0_42 = arith.constant 0 : index
    %44 = vector.load %arg3[%c0_41, %c0_42] : memref<13x128xf32, #tpu.memory_space<vmem>>, vector<13x128xf32>
    %45 = arith.mulf %43, %44 : vector<13x128xf32>
    %c1_43 = arith.constant 1 : index
    %c0_44 = arith.constant 0 : index
    %c0_45 = arith.constant 0 : index
    %46 = vector.load %arg4[%c1_43, %c0_44, %c0_45] : memref<2x13x128xf32, #tpu.memory_space<vmem>>, vector<1x13x128xf32>
    %47 = vector.shape_cast %46 : vector<1x13x128xf32> to vector<13x128xf32>
    %48 = vector.shape_cast %45 : vector<13x128xf32> to vector<1x13x128xf32>
    tpu.vector_store %arg4[%c1_43, %c0_44, %c0_45], %48 {strides = array<i32>} : memref<2x13x128xf32, #tpu.memory_space<vmem>>, vector<1x13x128xf32>,
    return
  }
  func.func @transform_0(%arg0: i32) -> (i32, i32) {
    %c0_i32 = arith.constant 0 : i32
    %c0_i32_0 = arith.constant 0 : i32
    return %arg0, %c0_i32 : i32, i32
  }
  func.func @transform_1(%arg0: i32) -> (i32, i32) {
    %c0_i32 = arith.constant 0 : i32
    %c0_i32_0 = arith.constant 0 : i32
    %c0_i32_1 = arith.constant 0 : i32
    return %c0_i32, %c0_i32_0 : i32, i32
  }
  func.func @transform_2(%arg0: i32) -> (i32, i32) {
    %c0_i32 = arith.constant 0 : i32
    %c0_i32_0 = arith.constant 0 : i32
    %c0_i32_1 = arith.constant 0 : i32
    return %c0_i32, %c0_i32_0 : i32, i32
  }
  func.func @transform_3(%arg0: i32) -> (i32, i32, i32) {
    %c0_i32 = arith.constant 0 : i32
    %c0_i32_0 = arith.constant 0 : i32
    %c0_i32_1 = arith.constant 0 : i32
    return %arg0, %c0_i32, %c0_i32_0 : i32, i32, i32
  }
}

</mosaic_0001>

<llo_original>
// kernel: tpu_custom_call.1
$region0: #{tpu_custom_call.1}
  #allocation0 [shape = 'u32[]', space=smem, size = 0x4, offset = 0x4, fixed_abs, tag = 'smem constant byte address 0x4 - core index']
  #allocation1 [shape = 'u32[144,128]{1,0:T(1,128)}', space=vmem, size = 0x12000, scoped, tag = 'internal scratch']
  %s0 = inlined_call_operand.hbm [shape: bf16[24,384], index: 0, kind: input, shape index: {}]
  %s1 = inlined_call_operand.hbm [shape: bf16[384,256], index: 1, kind: input, shape index: {}]
  %s2 = inlined_call_operand.hbm [shape: f32[13,128], index: 2, kind: input, shape index: {}]
  %s3 = inlined_call_operand.vmem [shape: f32[2,13,128], index: 3, kind: output, shape index: {}]
  %s4 = sld [smem:[#allocation0]]
  $region34: #{tpu_custom_call.1} parent=0
    _
  %s6 = ssub.s32 1, %s4
  %s7 = scalar_select 0, %s6, %s4
  $region1: #{tpu_custom_call.1} parent=0
    #allocation2 [shape = 'u8[18432]{0}', space=vmem, size = 0x4800, scoped, tag = 'input window, operand 0, single buffered']
    #allocation3 [shape = 's32[1]{0}', space=sflag, size = 0x4, scoped, tag = 'scoped memory for tpu_custom_call.1']
    #allocation4 [shape = 'u8[196608]{0}', space=vmem, size = 0x30000, scoped, tag = 'input window, operand 1, single buffered']
    #allocation5 [shape = 's32[1]{0}', space=sflag, size = 0x4, scoped, tag = 'scoped memory for tpu_custom_call.1']
    #allocation6 [shape = 'u8[8192]{0}', space=vmem, size = 0x2000, scoped, tag = 'input window, operand 2, single buffered']
    %8 = vsyncpa [#allocation3], 0
    %9 = vsyncpa [#allocation5], 0
    // Predicated region
    $region2: #{tpu_custom_call.1} parent=1 // pred_check
      _
    $region3: #{tpu_custom_call.1} parent=1 // pred_check_branch
      %11 = sbr.rel (0) target = $region5
    $region4: #{tpu_custom_call.1} parent=1 // pred_region
      %s13 = ssub.s32 576, 576
      %14 = vsyncadd [#allocation3], %s13
      %s15 = sshll.u32 [#allocation2], 4
      %s16 = int_to_ptr.vmem [resolvable:$true] %s15
      %21 = dma.hbm_to_vmem [thread:$0]  %s0, 576, %s16, [#allocation3], 192, 192, 12
    $region5: #{tpu_custom_call.1} parent=1 // pred_fallthru
      _
    // Predicated region
    $region6: #{tpu_custom_call.1} parent=1 // pred_check
      _
    $region7: #{tpu_custom_call.1} parent=1 // pred_check_branch
      %23 = sbr.rel (0) target = $region9
    $region8: #{tpu_custom_call.1} parent=1 // pred_region
      %s25 = ssub.s32 6144, 6144
      %26 = vsyncadd [#allocation5], %s25
      %s27 = sshll.u32 [#allocation4], 4
      %s28 = int_to_ptr.vmem [resolvable:$true] %s27
      %33 = dma.hbm_to_vmem [thread:$0]  %s1, 6144, %s28, [#allocation5], 128, 128, 8
    $region9: #{tpu_custom_call.1} parent=1 // pred_fallthru
      _
    // Predicated region
    $region10: #{tpu_custom_call.1} parent=1 // pred_check
      _
    $region11: #{tpu_custom_call.1} parent=1 // pred_check_branch
      %35 = sbr.rel (0) target = $region13
    $region12: #{tpu_custom_call.1} parent=1 // pred_region
      %s37 = ssub.s32 256, 256
      %38 = vsyncadd [#allocation5], %s37
      %s39 = sshll.u32 [#allocation6], 4
      %s40 = int_to_ptr.vmem [resolvable:$true] %s39
      %45 = dma.hbm_to_vmem [thread:$0]  %s2, 256, %s40, [#allocation5], 128, 128, 8
    $region13: #{tpu_custom_call.1} parent=1 // pred_fallthru
      _
    // Predicated region
    $region14: #{tpu_custom_call.1} parent=1 // pred_check
      _
    $region15: #{tpu_custom_call.1} parent=1 // pred_check_branch
      %47 = sbr.rel (0) target = $region17
    $region16: #{tpu_custom_call.1} parent=1 // pred_region
      %48 = dma.done [#allocation3], 576
    $region17: #{tpu_custom_call.1} parent=1 // pred_fallthru
      _
    // Predicated region
    $region18: #{tpu_custom_call.1} parent=1 // pred_check
      _
    $region19: #{tpu_custom_call.1} parent=1 // pred_check_branch
      %50 = sbr.rel (0) target = $region21
    $region20: #{tpu_custom_call.1} parent=1 // pred_region
      %51 = dma.done [#allocation5], 6144
    $region21: #{tpu_custom_call.1} parent=1 // pred_fallthru
      _
    // Predicated region
    $region22: #{tpu_custom_call.1} parent=1 // pred_check
      _
    $region23: #{tpu_custom_call.1} parent=1 // pred_check_branch
      %53 = sbr.rel (0) target = $region25
    $region24: #{tpu_custom_call.1} parent=1 // pred_region
      %54 = dma.done [#allocation5], 256
    $region25: #{tpu_custom_call.1} parent=1 // pred_fallthru
      _
    %v56 = vld [vmem:[#allocation2] sm:$0xff]
    %v57 = vld [vmem:[#allocation2 + $0x8] sm:$0xf]
    %v58 = vld [vmem:[#allocation2 + $0xc] sm:$0xff]
    %v59 = vld [vmem:[#allocation2 + $0x14] sm:$0xf]
    %v60 = vld [vmem:[#allocation2 + $0x18] sm:$0xff]
    %v61 = vld [vmem:[#allocation2 + $0x20] sm:$0xf]
    %v62 = vld [vmem:[#allocation4] sm:$0xff]
    %v63 = vld [vmem:[#allocation4 + $0x8] sm:$0xff]
    %v64 = vld [vmem:[#allocation4 + $0x10] sm:$0xff]
    %v65 = vld [vmem:[#allocation4 + $0x18] sm:$0xff]
    %v66 = vld [vmem:[#allocation4 + $0x20] sm:$0xff]
    %v67 = vld [vmem:[#allocation4 + $0x28] sm:$0xff]
    %v68 = vld [vmem:[#allocation4 + $0x30] sm:$0xff]
    %v69 = vld [vmem:[#allocation4 + $0x38] sm:$0xff]
    %v70 = vld [vmem:[#allocation4 + $0x40] sm:$0xff]
    %v71 = vld [vmem:[#allocation4 + $0x48] sm:$0xff]
    %v72 = vld [vmem:[#allocation4 + $0x50] sm:$0xff]
    %v73 = vld [vmem:[#allocation4 + $0x58] sm:$0xff]
    %v74 = vld [vmem:[#allocation4 + $0x60] sm:$0xff]
    %v75 = vld [vmem:[#allocation4 + $0x68] sm:$0xff]
    %v76 = vld [vmem:[#allocation4 + $0x70] sm:$0xff]
    %v77 = vld [vmem:[#allocation4 + $0x78] sm:$0xff]
    %v78 = vld [vmem:[#allocation4 + $0x80] sm:$0xff]
    %v79 = vld [vmem:[#allocation4 + $0x88] sm:$0xff]
    %v80 = vld [vmem:[#allocation4 + $0x90] sm:$0xff]
    %v81 = vld [vmem:[#allocation4 + $0x98] sm:$0xff]
    %v82 = vld [vmem:[#allocation4 + $0xa0] sm:$0xff]
    %v83 = vld [vmem:[#allocation4 + $0xa8] sm:$0xff]
    %v84 = vld [vmem:[#allocation4 + $0xb0] sm:$0xff]
    %v85 = vld [vmem:[#allocation4 + $0xb8] sm:$0xff]
    %v86 = vld [vmem:[#allocation4 + $0xc0] sm:$0xff]
    %v87 = vld [vmem:[#allocation4 + $0xc8] sm:$0xff]
    %v88 = vld [vmem:[#allocation4 + $0xd0] sm:$0xff]
    %v89 = vld [vmem:[#allocation4 + $0xd8] sm:$0xff]
    %v90 = vld [vmem:[#allocation4 + $0xe0] sm:$0xff]
    %v91 = vld [vmem:[#allocation4 + $0xe8] sm:$0xff]
    %v92 = vld [vmem:[#allocation4 + $0xf0] sm:$0xff]
    %v93 = vld [vmem:[#allocation4 + $0xf8] sm:$0xff]
    %v94 = vld [vmem:[#allocation4 + $0x100] sm:$0xff]
    %v95 = vld [vmem:[#allocation4 + $0x108] sm:$0xff]
    %v96 = vld [vmem:[#allocation4 + $0x110] sm:$0xff]
    %v97 = vld [vmem:[#allocation4 + $0x118] sm:$0xff]
    %v98 = vld [vmem:[#allocation4 + $0x120] sm:$0xff]
    %v99 = vld [vmem:[#allocation4 + $0x128] sm:$0xff]
    %v100 = vld [vmem:[#allocation4 + $0x130] sm:$0xff]
    %v101 = vld [vmem:[#allocation4 + $0x138] sm:$0xff]
    %v102 = vld [vmem:[#allocation4 + $0x140] sm:$0xff]
    %v103 = vld [vmem:[#allocation4 + $0x148] sm:$0xff]
    %v104 = vld [vmem:[#allocation4 + $0x150] sm:$0xff]
    %v105 = vld [vmem:[#allocation4 + $0x158] sm:$0xff]
    %v106 = vld [vmem:[#allocation4 + $0x160] sm:$0xff]
    %v107 = vld [vmem:[#allocation4 + $0x168] sm:$0xff]
    %v108 = vld [vmem:[#allocation4 + $0x170] sm:$0xff]
    %v109 = vld [vmem:[#allocation4 + $0x178] sm:$0xff]
    %v116 = vunpack.c.l.b16 %v56
    %v117 = vunpack.c.h.b16 %v56
    %v118 = vunpack.c.l.b16 %v57
    %v119 = vunpack.c.l.b16 %v58
    %v120 = vunpack.c.h.b16 %v58
    %v121 = vunpack.c.l.b16 %v59
    %v122 = vunpack.c.l.b16 %v60
    %v123 = vunpack.c.h.b16 %v60
    %v124 = vunpack.c.l.b16 %v61
    %v125 = vpack.c.b16 %v119, %v116
    %v126 = vpack.c.b16 %v120, %v117
    %v127 = vpack.c.b16 %v121, %v118
    %v128 = vpack.c.b16 %v122, %v122
    %v129 = vpack.c.b16 %v123, %v123
    %v130 = vpack.c.b16 %v124, %v124
    %v185 = vunpack.c.l.b16 %v62
    %v186 = vunpack.c.h.b16 %v62
    %v187 = vunpack.c.l.b16 %v63
    %v188 = vunpack.c.h.b16 %v63
    %v189 = vunpack.c.l.b16 %v64
    %v190 = vunpack.c.h.b16 %v64
    %v191 = vunpack.c.l.b16 %v65
    %v192 = vunpack.c.h.b16 %v65
    %v193 = vunpack.c.l.b16 %v66
    %v194 = vunpack.c.h.b16 %v66
    %v195 = vunpack.c.l.b16 %v67
    %v196 = vunpack.c.h.b16 %v67
    %v197 = vunpack.c.l.b16 %v68
    %v198 = vunpack.c.h.b16 %v68
    %v199 = vunpack.c.l.b16 %v69
    %v200 = vunpack.c.h.b16 %v69
    %v201 = vunpack.c.l.b16 %v70
    %v202 = vunpack.c.h.b16 %v70
    %v203 = vunpack.c.l.b16 %v71
    %v204 = vunpack.c.h.b16 %v71
    %v205 = vunpack.c.l.b16 %v72
    %v206 = vunpack.c.h.b16 %v72
    %v207 = vunpack.c.l.b16 %v73
    %v208 = vunpack.c.h.b16 %v73
    %v209 = vunpack.c.l.b16 %v74
    %v210 = vunpack.c.h.b16 %v74
    %v211 = vunpack.c.l.b16 %v75
    %v212 = vunpack.c.h.b16 %v75
    %v213 = vunpack.c.l.b16 %v76
    %v214 = vunpack.c.h.b16 %v76
    %v215 = vunpack.c.l.b16 %v77
    %v216 = vunpack.c.h.b16 %v77
    %v217 = vunpack.c.l.b16 %v78
    %v218 = vunpack.c.h.b16 %v78
    %v219 = vunpack.c.l.b16 %v79
    %v220 = vunpack.c.h.b16 %v79
    %v221 = vunpack.c.l.b16 %v80
    %v222 = vunpack.c.h.b16 %v80
    %v223 = vunpack.c.l.b16 %v81
    %v224 = vunpack.c.h.b16 %v81
    %v225 = vunpack.c.l.b16 %v82
    %v226 = vunpack.c.h.b16 %v82
    %v227 = vunpack.c.l.b16 %v83
    %v228 = vunpack.c.h.b16 %v83
    %v229 = vunpack.c.l.b16 %v84
    %v230 = vunpack.c.h.b16 %v84
    %v231 = vunpack.c.l.b16 %v85
    %v232 = vunpack.c.h.b16 %v85
    %v233 = vunpack.c.l.b16 %v86
    %v234 = vunpack.c.h.b16 %v86
    %v235 = vunpack.c.l.b16 %v87
    %v236 = vunpack.c.h.b16 %v87
    %v237 = vunpack.c.l.b16 %v88
    %v238 = vunpack.c.h.b16 %v88
    %v239 = vunpack.c.l.b16 %v89
    %v240 = vunpack.c.h.b16 %v89
    %v241 = vunpack.c.l.b16 %v90
    %v242 = vunpack.c.h.b16 %v90
    %v243 = vunpack.c.l.b16 %v91
    %v244 = vunpack.c.h.b16 %v91
    %v245 = vunpack.c.l.b16 %v92
    %v246 = vunpack.c.h.b16 %v92
    %v247 = vunpack.c.l.b16 %v93
    %v248 = vunpack.c.h.b16 %v93
    %v249 = vunpack.c.l.b16 %v94
    %v250 = vunpack.c.h.b16 %v94
    %v251 = vunpack.c.l.b16 %v95
    %v252 = vunpack.c.h.b16 %v95
    %v253 = vunpack.c.l.b16 %v96
    %v254 = vunpack.c.h.b16 %v96
    %v255 = vunpack.c.l.b16 %v97
    %v256 = vunpack.c.h.b16 %v97
    %v257 = vunpack.c.l.b16 %v98
    %v258 = vunpack.c.h.b16 %v98
    %v259 = vunpack.c.l.b16 %v99
    %v260 = vunpack.c.h.b16 %v99
    %v261 = vunpack.c.l.b16 %v100
    %v262 = vunpack.c.h.b16 %v100
    %v263 = vunpack.c.l.b16 %v101
    %v264 = vunpack.c.h.b16 %v101
    %v265 = vunpack.c.l.b16 %v102
    %v266 = vunpack.c.h.b16 %v102
    %v267 = vunpack.c.l.b16 %v103
    %v268 = vunpack.c.h.b16 %v103
    %v269 = vunpack.c.l.b16 %v104
    %v270 = vunpack.c.h.b16 %v104
    %v271 = vunpack.c.l.b16 %v105
    %v272 = vunpack.c.h.b16 %v105
    %v273 = vunpack.c.l.b16 %v106
    %v274 = vunpack.c.h.b16 %v106
    %v275 = vunpack.c.l.b16 %v107
    %v276 = vunpack.c.h.b16 %v107
    %v277 = vunpack.c.l.b16 %v108
    %v278 = vunpack.c.h.b16 %v108
    %v279 = vunpack.c.l.b16 %v109
    %v280 = vunpack.c.h.b16 %v109
    %v281 = vpack.c.b16 %v187, %v185
    %v282 = vpack.c.b16 %v188, %v186
    %v283 = vpack.c.b16 %v191, %v189
    %v284 = vpack.c.b16 %v192, %v190
    %v285 = vpack.c.b16 %v195, %v193
    %v286 = vpack.c.b16 %v196, %v194
    %v287 = vpack.c.b16 %v199, %v197
    %v288 = vpack.c.b16 %v200, %v198
    %v289 = vpack.c.b16 %v203, %v201
    %v290 = vpack.c.b16 %v204, %v202
    %v291 = vpack.c.b16 %v207, %v205
    %v292 = vpack.c.b16 %v208, %v206
    %v293 = vpack.c.b16 %v211, %v209
    %v294 = vpack.c.b16 %v212, %v210
    %v295 = vpack.c.b16 %v215, %v213
    %v296 = vpack.c.b16 %v216, %v214
    %v297 = vpack.c.b16 %v219, %v217
    %v298 = vpack.c.b16 %v220, %v218
    %v299 = vpack.c.b16 %v223, %v221
    %v300 = vpack.c.b16 %v224, %v222
    %v301 = vpack.c.b16 %v227, %v225
    %v302 = vpack.c.b16 %v228, %v226
    %v303 = vpack.c.b16 %v231, %v229
    %v304 = vpack.c.b16 %v232, %v230
    %v305 = vpack.c.b16 %v235, %v233
    %v306 = vpack.c.b16 %v236, %v234
    %v307 = vpack.c.b16 %v239, %v237
    %v308 = vpack.c.b16 %v240, %v238
    %v309 = vpack.c.b16 %v243, %v241
    %v310 = vpack.c.b16 %v244, %v242
    %v311 = vpack.c.b16 %v247, %v245
    %v312 = vpack.c.b16 %v248, %v246
    %v313 = vpack.c.b16 %v251, %v249
    %v314 = vpack.c.b16 %v252, %v250
    %v315 = vpack.c.b16 %v255, %v253
    %v316 = vpack.c.b16 %v256, %v254
    %v317 = vpack.c.b16 %v259, %v257
    %v318 = vpack.c.b16 %v260, %v258
    %v319 = vpack.c.b16 %v263, %v261
    %v320 = vpack.c.b16 %v264, %v262
    %v321 = vpack.c.b16 %v267, %v265
    %v322 = vpack.c.b16 %v268, %v266
    %v323 = vpack.c.b16 %v271, %v269
    %v324 = vpack.c.b16 %v272, %v270
    %v325 = vpack.c.b16 %v275, %v273
    %v326 = vpack.c.b16 %v276, %v274
    %v327 = vpack.c.b16 %v279, %v277
    %v328 = vpack.c.b16 %v280, %v278
    %377 = vmatprep.subr.bf16.mxu0 %v282
    %378 = vmatpush1.bf16.msra.mxu0 %v281
    %379 = vmatprep.subr.bf16.mxu0 %v284
    %380 = vmatpush1.bf16.msra.mxu0 %v283
    %381 = vmatprep.subr.bf16.mxu0 %v286
    %382 = vmatpush1.bf16.msra.mxu0 %v285
    %383 = vmatprep.subr.bf16.mxu0 %v288
    %384 = vmatpush1.bf16.msra.mxu0 %v287
    %385 = vmatprep.subr.bf16.mxu0 %v290
    %386 = vmatpush1.bf16.msra.mxu0 %v289
    %387 = vmatprep.subr.bf16.mxu0 %v292
    %388 = vmatpush1.bf16.msra.mxu0 %v291
    %389 = vmatprep.subr.bf16.mxu0 %v294
    %390 = vmatpush1.bf16.msra.mxu0 %v293
    %391 = vmatprep.subr.bf16.mxu0 %v296
    %392 = vmatpush1.bf16.msra.mxu0 %v295
    %393 = vmatprep.subr.bf16.mxu0 %v298
    %394 = vmatpush1.bf16.msra.mxu0 %v297
    %395 = vmatprep.subr.bf16.mxu0 %v300
    %396 = vmatpush1.bf16.msra.mxu0 %v299
    %397 = vmatprep.subr.bf16.mxu0 %v302
    %398 = vmatpush1.bf16.msra.mxu0 %v301
    %399 = vmatprep.subr.bf16.mxu0 %v304
    %400 = vmatpush1.bf16.msra.mxu0 %v303
    %401 = vmatprep.subr.bf16.mxu0 %v306
    %402 = vmatpush1.bf16.msra.mxu0 %v305
    %403 = vmatprep.subr.bf16.mxu0 %v308
    %404 = vmatpush1.bf16.msra.mxu0 %v307
    %405 = vmatprep.subr.bf16.mxu0 %v310
    %406 = vmatpush1.bf16.msra.mxu0 %v309
    %407 = vmatprep.subr.bf16.mxu0 %v312
    %408 = vmatpush1.bf16.msra.mxu0 %v311
    %409 = vmatprep.mubr.bf16.mxu0 %v126
    %410 = vmatmul.mubr.bf16.gmra.mrb[0].mxu0 %v125
    %v411 = vpop.f32.mrb[0].mxu0
    %v412 = vadd.f32 0.0, %v411
    %v413 = vpop.f32.mrb[0].mxu0
    %v414 = vadd.f32 0.0, %v413
    %v415 = vpop.f32.mrb[0].mxu0
    %v416 = vadd.f32 0.0, %v415
    %v417 = vpop.f32.mrb[0].mxu0
    %v418 = vadd.f32 0.0, %v417
    %419 = vmatprep.mubr.bf16.mxu0 %v129
    %420 = vmatmul.mubr.bf16.gmra.mrb[0].mxu0 %v128
    %v421 = vpop.f32.mrb[0].mxu0
    %v422 = vadd.f32 0.0, %v421
    %v423 = vpop.f32.mrb[0].mxu0
    %v424 = vadd.f32 0.0, %v423
    %v425 = vpop.f32.mrb[0].mxu0
    %v426 = vpop.f32.mrb[0].mxu0
    %427 = vdwg.mxu0
    %428 = vmatprep.subr.bf16.mxu0 %v314
    %429 = vmatpush1.bf16.msra.mxu0 %v313
    %430 = vmatprep.subr.bf16.mxu0 %v316
    %431 = vmatpush1.bf16.msra.mxu0 %v315
    %432 = vmatprep.subr.bf16.mxu0 %v318
    %433 = vmatpush1.bf16.msra.mxu0 %v317
    %434 = vmatprep.subr.bf16.mxu0 %v320
    %435 = vmatpush1.bf16.msra.mxu0 %v319
    %436 = vmatprep.subr.bf16.mxu0 %v322
    %437 = vmatpush1.bf16.msra.mxu0 %v321
    %438 = vmatprep.subr.bf16.mxu0 %v324
    %439 = vmatpush1.bf16.msra.mxu0 %v323
    %440 = vmatprep.subr.bf16.mxu0 %v326
    %441 = vmatpush1.bf16.msra.mxu0 %v325
    %442 = vmatprep.subr.bf16.mxu0 %v328
    %443 = vmatpush1.bf16.msra.mxu0 %v327
    %444 = vmatprep.subr.bf16.mxu0 0
    %445 = vmatpush1.bf16.msra.mxu0 0
    %446 = vmatprep.subr.bf16.mxu0 0
    %447 = vmatpush1.bf16.msra.mxu0 0
    %448 = vmatprep.subr.bf16.mxu0 0
    %449 = vmatpush1.bf16.msra.mxu0 0
    %450 = vmatprep.subr.bf16.mxu0 0
    %451 = vmatpush1.bf16.msra.mxu0 0
    %452 = vmatprep.subr.bf16.mxu0 0
    %453 = vmatpush1.bf16.msra.mxu0 0
    %454 = vmatprep.subr.bf16.mxu0 0
    %455 = vmatpush1.bf16.msra.mxu0 0
    %456 = vmatprep.subr.bf16.mxu0 0
    %457 = vmatpush1.bf16.msra.mxu0 0
    %458 = vmatprep.subr.bf16.mxu0 0
    %459 = vmatpush1.bf16.msra.mxu0 0
    %460 = vmatprep.mubr.bf16.mxu0 0
    %461 = vmatmul.mubr.bf16.gmra.mrb[0].mxu0 %v127
    %v462 = vpop.f32.mrb[0].mxu0
    %v463 = vadd.f32 %v412, %v462
    %v464 = vpop.f32.mrb[0].mxu0
    %v465 = vadd.f32 %v414, %v464
    %v466 = vpop.f32.mrb[0].mxu0
    %v467 = vadd.f32 %v416, %v466
    %v468 = vpop.f32.mrb[0].mxu0
    %v469 = vadd.f32 %v418, %v468
    %470 = vmatprep.mubr.bf16.mxu0 0
    %471 = vmatmul.mubr.bf16.gmra.mrb[0].mxu0 %v130
    %v472 = vpop.f32.mrb[0].mxu0
    %v473 = vadd.f32 %v422, %v472
    %v474 = vpop.f32.mrb[0].mxu0
    %v475 = vadd.f32 %v424, %v474
    %v476 = vpop.f32.mrb[0].mxu0
    %v477 = vpop.f32.mrb[0].mxu0
    %478 = vdwg.mxu0
    %479 = vst [vmem:[%s3] sm:$0xff] 0.0
    %480 = vst [vmem:[%s3 + $0x8] sm:$0x1f] 0.0
    %481 = vst [vmem:[%s3 + $0x10] sm:$0xff] 0.0
    %482 = vst [vmem:[%s3 + $0x18] sm:$0x1f] 0.0
    %v483 = vld [vmem:[%s3] sm:$0xff]
    %v484 = vld [vmem:[%s3 + $0x8] sm:$0xf]
    %v485 = vadd.f32 %v483, %v463
    %v486 = vadd.f32 %v484, %v467
    %487 = vst [vmem:[%s3] sm:$0xff] %v485
    %488 = vst [vmem:[%s3 + $0x8] sm:$0xf] %v486
    %v489 = vld [vmem:[%s3 + $0x1] sm:$0xff]
    %v490 = vld [vmem:[%s3 + $0x9] sm:$0xf]
    %v491 = vadd.f32 %v489, %v465
    %v492 = vadd.f32 %v490, %v469
    %493 = vst [vmem:[%s3 + $0x1] sm:$0xff] %v491
    %494 = vst [vmem:[%s3 + $0x9] sm:$0xf] %v492
    %v495 = vld [vmem:[%s3] sm:$0xff]
    %v496 = vld [vmem:[%s3 + $0x8] sm:$0x1f]
    %v497 = vld [vmem:[#allocation6] sm:$0xff]
    %v498 = vld [vmem:[#allocation6 + $0x8] sm:$0x1f]
    %v499 = vmul.f32 %v495, %v497
    %v500 = vmul.f32 %v496, %v498
    %501 = vst [vmem:[%s3] sm:$0xff] %v499
    %502 = vst [vmem:[%s3 + $0x8] sm:$0x1f] %v500
    %s503 = scalar_lea.vmem %s3, 16
    %v504 = vld [vmem:[%s503] sm:$0xff]
    %v505 = vld [vmem:[%s503 + $0x8] sm:$0xf]
    %vm508 = vcmask 1043456
    %v509 = vrot.slane %v467, 4
    %v510 = vrot.slane %v473, 4
    %v511 = vsel %vm508, %v509, %v510
    %v514 = vadd.f32 %v504, %v511
    %v515 = vadd.f32 %v505, %v510
    %516 = vst [vmem:[%s503] sm:$0xff] %v514
    %517 = vst [vmem:[%s503 + $0x8] sm:$0xf] %v515
    %v518 = vld [vmem:[%s503 + $0x1] sm:$0xff]
    %v519 = vld [vmem:[%s503 + $0x9] sm:$0xf]
    %v522 = vrot.slane %v469, 4
    %v523 = vrot.slane %v475, 4
    %v524 = vsel %vm508, %v522, %v523
    %v527 = vadd.f32 %v518, %v524
    %v528 = vadd.f32 %v519, %v523
    %529 = vst [vmem:[%s503 + $0x1] sm:$0xff] %v527
    %530 = vst [vmem:[%s503 + $0x9] sm:$0xf] %v528
    %v531 = vld [vmem:[%s503] sm:$0xff]
    %v532 = vld [vmem:[%s503 + $0x8] sm:$0x1f]
    %v533 = vld [vmem:[#allocation6] sm:$0xff]
    %v534 = vld [vmem:[#allocation6 + $0x8] sm:$0x1f]
    %v535 = vmul.f32 %v531, %v533
    %v536 = vmul.f32 %v532, %v534
    %537 = vst [vmem:[%s503] sm:$0xff] %v535
    %538 = vst [vmem:[%s503 + $0x8] sm:$0x1f] %v536
    // Predicated region
    $region26: #{tpu_custom_call.1} parent=1 // pred_check
      _
    $region27: #{tpu_custom_call.1} parent=1 // pred_check_branch
      %540 = sbr.rel (0) target = $region29
    $region28: #{tpu_custom_call.1} parent=1 // pred_region
      _
    $region29: #{tpu_custom_call.1} parent=1 // pred_fallthru
      _
    // Predicated region
    $region30: #{tpu_custom_call.1} parent=1 // pred_check
      _
    $region31: #{tpu_custom_call.1} parent=1 // pred_check_branch
      %542 = sbr.rel (0) target = $region33
    $region32: #{tpu_custom_call.1} parent=1 // pred_region
      _
    $region33: #{tpu_custom_call.1} parent=1 // pred_fallthru
      _
    %543 = vsyncpa [#allocation3], 1
    %544 = vsyncpa [#allocation5], 1

</llo_original>
